<compile_context>
chip_gen: v6e
topology: v6e:2x2x1
jax: 0.10.0
libtpu: 0.0.40
codegen_flags: <defaults>
</compile_context>

<pallas_src>
import jax
import jax.numpy as jnp
from jax.experimental import pallas as pl
from jax.experimental.pallas import tpu as pltpu

_LANE = 128
_MAX_BLOCK_ROWS = 2048  # 2048 * 128 * 4 B = 1 MiB per f32 block buffer


def _make_gmof_kernel(rho2: float):
    """Build an elementwise GMoF kernel with rho^2 baked in as a constant."""

    def kernel(x_ref, o_ref):
        x = x_ref[...].astype(jnp.float32)
        sq = x * x
        # rho^2 * sq / (sq + rho^2); reciprocal goes to the EUP slot.
        res = (rho2 * sq) * pl.reciprocal(sq + rho2, approx=False)
        o_ref[...] = res.astype(o_ref.dtype)

    return kernel


def gmof(residual: jax.Array, rho: float = 1.0) -> jax.Array:
    """Pallas TPU implementation of GMoF.forward."""
    orig_shape = residual.shape
    orig_dtype = residual.dtype
    rho2 = float(rho) * float(rho)

    n = residual.size
    if n == 0:
        return residual

    x = residual.reshape(-1)
    n_main = (n // _LANE) * _LANE  # 128-aligned prefix handled by Pallas

    pieces = []

    if n_main > 0:
        rows = n_main // _LANE
        if n_main == n:
            x2d = x.reshape(rows, _LANE)            # pure view, no copy
        else:
            x2d = x[:n_main].reshape(rows, _LANE)   # only when a tail exists

        if rows <= _MAX_BLOCK_ROWS:
            # Single full-extent block (block == full dims, so no (8,128)
            # divisibility requirement and no degenerate tiny tiles).
            block_rows = rows
        else:
            block_rows = _MAX_BLOCK_ROWS
        grid = (pl.cdiv(rows, block_rows),)

        out2d = pl.pallas_call(
            _make_gmof_kernel(rho2),
            out_shape=jax.ShapeDtypeStruct((rows, _LANE), orig_dtype),
            grid=grid,
            in_specs=[pl.BlockSpec((block_rows, _LANE), lambda i: (i, 0))],
            out_specs=pl.BlockSpec((block_rows, _LANE), lambda i: (i, 0)),
            compiler_params=pltpu.CompilerParams(
                dimension_semantics=("parallel",)
            ),
        )(x2d)
        pieces.append(out2d.reshape(-1))

    if n_main != n:
        # Tiny (<128-element) tail: plain jnp, negligible cost.
        tail = x[n_main:].astype(jnp.float32)
        sq = tail * tail
        pieces.append((rho2 * sq / (sq + rho2)).astype(orig_dtype))

    out = pieces[0] if len(pieces) == 1 else jnp.concatenate(pieces)
    return out.reshape(orig_shape)


if __name__ == "__main__":
    key = jax.random.PRNGKey(0)
    # Small NCHW-like residual tensor, consistent with typical GMoF usage.
    residual = jax.random.normal(key, (2, 4, 16, 16), dtype=jnp.float32)
    rho = 1.0

    out = gmof(residual, rho=rho)
    out = jax.block_until_ready(out)

    # Reference check in plain JAX.
    sq = residual ** 2
    ref = (rho ** 2) * (sq / (sq + rho ** 2))
    assert out.shape == residual.shape
    assert out.dtype == residual.dtype
    assert jnp.allclose(out, ref, atol=1e-6, rtol=1e-6)

    print("KERNEL_OK")
</pallas_src>

<mosaic_0001>
module attributes {stable_mosaic.version = 11 : i64} {
  func.func @kernel(%arg0: i32, %arg1: memref<16x128xf32, #tpu.memory_space<vmem>>, %arg2: memref<16x128xf32, #tpu.memory_space<vmem>>) attributes {dimension_semantics = [#tpu.dimension_semantics<parallel>], iteration_bounds = array<i64: 1>, scalar_prefetch = 0 : i64, scratch_operands = 0 : i64, tpu.core_type = #tpu.core_type<tc>, window_params = [{transform_indices = @transform_0, window_bounds = array<i64: 16, 128>}, {transform_indices = @transform_1, window_bounds = array<i64: 16, 128>}]} {
    %c0 = arith.constant 0 : index
    %c0_0 = arith.constant 0 : index
    %0 = vector.load %arg1[%c0, %c0_0] : memref<16x128xf32, #tpu.memory_space<vmem>>, vector<16x128xf32>
    %1 = arith.mulf %0, %0 : vector<16x128xf32>
    %cst = arith.constant 1.000000e+00 : f32
    %2 = vector.broadcast %cst : f32 to vector<16x128xf32>
    %3 = arith.mulf %2, %1 : vector<16x128xf32>
    %cst_1 = arith.constant 1.000000e+00 : f32
    %4 = vector.broadcast %cst_1 : f32 to vector<16x128xf32>
    %5 = arith.addf %1, %4 : vector<16x128xf32>
    %6 = tpu.reciprocal %5 : vector<16x128xf32> -> vector<16x128xf32>
    %7 = arith.mulf %3, %6 : vector<16x128xf32>
    %c0_2 = arith.constant 0 : index
    %c0_3 = arith.constant 0 : index
    %8 = vector.load %arg2[%c0_2, %c0_3] : memref<16x128xf32, #tpu.memory_space<vmem>>, vector<16x128xf32>
    tpu.vector_store %arg2[%c0_2, %c0_3], %7 {strides = array<i32>} : memref<16x128xf32, #tpu.memory_space<vmem>>, vector<16x128xf32>,
    return
  }
  func.func @transform_0(%arg0: i32) -> (i32, i32) {
    %c0_i32 = arith.constant 0 : i32
    %c0_i32_0 = arith.constant 0 : i32
    return %arg0, %c0_i32 : i32, i32
  }
  func.func @transform_1(%arg0: i32) -> (i32, i32) {
    %c0_i32 = arith.constant 0 : i32
    %c0_i32_0 = arith.constant 0 : i32
    return %arg0, %c0_i32 : i32, i32
  }
}

</mosaic_0001>

<llo_original>
// kernel: tpu_custom_call.1
$region0: #{tpu_custom_call.1}
  #allocation0 [shape = 'u32[]', space=smem, size = 0x4, offset = 0x4, fixed_abs, tag = 'smem constant byte address 0x4 - core index']
  #allocation1 [shape = 'u32[144,128]{1,0:T(1,128)}', space=vmem, size = 0x12000, scoped, tag = 'internal scratch']
  %s0 = inlined_call_operand.hbm [shape: f32[16,128], index: 0, kind: input, shape index: {}]
  %s1 = inlined_call_operand.hbm [shape: f32[16,128], index: 1, kind: output, shape index: {}]
  %s2 = sld [smem:[#allocation0]]
  $region18: #{tpu_custom_call.1} parent=0
    _
  %s4 = ssub.s32 1, %s2
  %s5 = scalar_select 0, %s4, %s2
  $region1: #{tpu_custom_call.1} parent=0
    #allocation2 [shape = 'u8[8192]{0}', space=vmem, size = 0x2000, scoped, tag = 'input window, operand 0, single buffered']
    #allocation3 [shape = 's32[1]{0}', space=sflag, size = 0x4, scoped, tag = 'scoped memory for tpu_custom_call.1']
    #allocation4 [shape = 's32[1]{0}', space=sflag, size = 0x4, scoped, tag = 'scoped memory for tpu_custom_call.1']
    #allocation5 [shape = 'u8[8192]{0}', space=vmem, size = 0x2000, scoped, tag = 'output window, operand 0, single buffered']
    %6 = vsyncpa [#allocation3], 0
    %7 = vsyncpa [#allocation4], 0
    // Predicated region
    $region2: #{tpu_custom_call.1} parent=1 // pred_check
      _
    $region3: #{tpu_custom_call.1} parent=1 // pred_check_branch
      %9 = sbr.rel (0) target = $region5
    $region4: #{tpu_custom_call.1} parent=1 // pred_region
      %s11 = ssub.s32 256, 256
      %12 = vsyncadd [#allocation3], %s11
      %s13 = sshll.u32 [#allocation2], 4
      %s14 = int_to_ptr.vmem [resolvable:$true] %s13
      %19 = dma.hbm_to_vmem [thread:$0]  %s0, 256, %s14, [#allocation3], 128, 128, 8
    $region5: #{tpu_custom_call.1} parent=1 // pred_fallthru
      _
    // Predicated region
    $region6: #{tpu_custom_call.1} parent=1 // pred_check
      _
    $region7: #{tpu_custom_call.1} parent=1 // pred_check_branch
      %21 = sbr.rel (0) target = $region9
    $region8: #{tpu_custom_call.1} parent=1 // pred_region
      %22 = dma.done [#allocation3], 256
    $region9: #{tpu_custom_call.1} parent=1 // pred_fallthru
      _
    %v23 = vld [vmem:[#allocation2] sm:$0xff]
    %v24 = vld [vmem:[#allocation2 + $0x8] sm:$0xff]
    %v25 = vmul.f32 %v23, %v23
    %v26 = vmul.f32 %v24, %v24
    %v27 = vadd.f32 %v25, 1.0
    %v28 = vadd.f32 %v26, 1.0
    %v29 = vrcp.pop %v27
    %v30 = vrcp.pop %v28
    %v31 = vmul.f32 %v25, %v29
    %v32 = vmul.f32 %v26, %v30
    %33 = vst [vmem:[#allocation5] sm:$0xff] %v31
    %34 = vst [vmem:[#allocation5 + $0x8] sm:$0xff] %v32
    // Predicated region
    $region10: #{tpu_custom_call.1} parent=1 // pred_check
      _
    $region11: #{tpu_custom_call.1} parent=1 // pred_check_branch
      %36 = sbr.rel (0) target = $region13
    $region12: #{tpu_custom_call.1} parent=1 // pred_region
      %s38 = ssub.s32 256, 256
      %39 = vsyncadd [#allocation4], %s38
      %s40 = sshll.u32 [#allocation5], 4
      %s41 = int_to_ptr.vmem [resolvable:$true] %s40
      %46 = dma.vmem_to_hbm [thread:$0]  %s41, 256, %s1, [#allocation4], 128, 128, 8
    $region13: #{tpu_custom_call.1} parent=1 // pred_fallthru
      _
    // Predicated region
    $region14: #{tpu_custom_call.1} parent=1 // pred_check
      _
    $region15: #{tpu_custom_call.1} parent=1 // pred_check_branch
      %48 = sbr.rel (0) target = $region17
    $region16: #{tpu_custom_call.1} parent=1 // pred_region
      %49 = dma.done [#allocation4], 256
    $region17: #{tpu_custom_call.1} parent=1 // pred_fallthru
      _
    %50 = vsyncpa [#allocation3], 1
    %51 = vsyncpa [#allocation4], 1

</llo_original>
